<compile_context>
chip_gen: v6e
topology: v6e:2x2x1
jax: 0.10.0
libtpu: 0.0.40
codegen_flags: <defaults>
</compile_context>

<pallas_src>
import jax
import jax.numpy as jnp
from jax.experimental import pallas as pl
from jax.experimental.pallas import tpu as pltpu

IN_DIM = 16
OUT_DIM = 148  # true final width of fc4 (== full last dim of the output)

_TILE_CANDIDATES = (2048, 1024, 512, 256)


# ----------------------------------------------------------------------------
# Pallas kernel: fused 4-layer MLP, one batch tile per grid step.  All matmuls
# run on the MXU with f32 accumulation; ReLU between layers 1-3; final layer is
# a plain affine, stored at its native 148-lane width.
# ----------------------------------------------------------------------------
def _mlp_kernel(x_ref,
                w1_ref, b1_ref,
                w2_ref, b2_ref,
                w3_ref, b3_ref,
                w4_ref, b4_ref,
                o_ref):
    h = jnp.dot(x_ref[...], w1_ref[...], preferred_element_type=jnp.float32)
    h = jnp.maximum(h + b1_ref[...], 0.0)                               # (tb, 32)
    h = jnp.dot(h, w2_ref[...], preferred_element_type=jnp.float32)
    h = jnp.maximum(h + b2_ref[...], 0.0)                               # (tb, 64)
    h = jnp.dot(h, w3_ref[...], preferred_element_type=jnp.float32)
    h = jnp.maximum(h + b3_ref[...], 0.0)                               # (tb, 128)
    h = jnp.dot(h, w4_ref[...], preferred_element_type=jnp.float32)
    o_ref[...] = (h + b4_ref[...]).astype(o_ref.dtype)                  # (tb, 148)


def _round_up(n, m):
    return ((n + m - 1) // m) * m


def _choose_tiling(B):
    """Return (tb, Bp): batch tile and (possibly padded) batch size, Bp % tb == 0.

    Preference order:
      1. A tile in {2048,1024,512,256} that divides B exactly with >=2 grid
         steps (no padding, no post-slice, both v7x TCs + pipelining engaged).
      2. One full-extent block (legal for any B, incl. non-multiples of 8).
      3. Large awkward B: 1024-row tiles with row padding (bounded VMEM).
    """
    if B >= 512 and B % 8 == 0:
        for tb in _TILE_CANDIDATES:
            if B % tb == 0 and B // tb >= 2:
                return tb, B
    if B <= 4096:
        return B, B
    tb = 1024
    return tb, _round_up(B, tb)


def outlier_graph_decoding(x, params, *, out_dtype=jnp.float32):
    """Forward pass of OutlierGraphDecoding via a single fused Pallas kernel.

    x: (B, 16) float32.  params: dict of pre-transposed (in, out) weights and
    (1, out) biases.  out_dtype=jnp.bfloat16 halves the dominant output HBM
    writeback (f32 accumulation is kept; only the final store is cast).
    """
    B, in_dim = x.shape
    assert in_dim == IN_DIM, in_dim

    w1, b1 = params["w1"], params["b1"]
    w2, b2 = params["w2"], params["b2"]
    w3, b3 = params["w3"], params["b3"]
    w4, b4 = params["w4"], params["b4"]

    tb, Bp = _choose_tiling(B)
    if Bp != B:
        x = jnp.pad(x, ((0, Bp - B), (0, 0)))   # rare fallback path only
    grid = (Bp // tb,)

    def resident(a):
        # Full-extent block + constant index_map -> stays resident in VMEM.
        return pl.BlockSpec(a.shape, lambda i: (0, 0))

    flops = 2 * Bp * (16 * 32 + 32 * 64 + 64 * 128 + 128 * OUT_DIM)
    w_bytes = sum(int(a.size) * a.dtype.itemsize
                  for a in (w1, b1, w2, b2, w3, b3, w4, b4))
    bytes_accessed = (Bp * IN_DIM * 4
                      + Bp * OUT_DIM * jnp.dtype(out_dtype).itemsize
                      + w_bytes)

    out = pl.pallas_call(
        _mlp_kernel,
        out_shape=jax.ShapeDtypeStruct((Bp, OUT_DIM), out_dtype),
        grid_spec=pltpu.PrefetchScalarGridSpec(
            num_scalar_prefetch=0,
            grid=grid,
            in_specs=[
                pl.BlockSpec((tb, IN_DIM), lambda i: (i, 0)),  # x tile
                resident(w1), resident(b1),
                resident(w2), resident(b2),
                resident(w3), resident(b3),
                resident(w4), resident(b4),
            ],
            out_specs=pl.BlockSpec((tb, OUT_DIM), lambda i: (i, 0)),
        ),
        compiler_params=pltpu.CompilerParams(
            dimension_semantics=("parallel",)),
        cost_estimate=pl.CostEstimate(
            flops=flops, transcendentals=0, bytes_accessed=bytes_accessed),
    )(x, w1, b1, w2, b2, w3, b3, w4, b4)

    if Bp != B:
        out = out[:B]   # row-only slice, taken only when padding was required
    return out


def init_params(key):
    """Deterministic init matching PyTorch nn.Linear shapes.

    PyTorch Linear(in, out) stores weight (out, in); we store the transpose
    (in, out) so the kernel computes x @ W + b == x @ weight.T + bias.
    Uses U(-1/sqrt(in), 1/sqrt(in)) like torch's default reset.  Biases are
    kept 2D (1, out) for a TPU-friendly layout.
    """
    dims = [(16, 32), (32, 64), (64, 128), (128, OUT_DIM)]
    params = {}
    for idx, (fan_in, fan_out) in enumerate(dims, start=1):
        key, kw, kb = jax.random.split(key, 3)
        bound = 1.0 / jnp.sqrt(float(fan_in))
        params[f"w{idx}"] = jax.random.uniform(
            kw, (fan_in, fan_out), jnp.float32, -bound, bound)
        params[f"b{idx}"] = jax.random.uniform(
            kb, (1, fan_out), jnp.float32, -bound, bound)
    return params


def reference_forward(x, params):
    h = jnp.maximum(x @ params["w1"] + params["b1"], 0.0)
    h = jnp.maximum(h @ params["w2"] + params["b2"], 0.0)
    h = jnp.maximum(h @ params["w3"] + params["b3"], 0.0)
    return h @ params["w4"] + params["b4"]


if __name__ == "__main__":
    key = jax.random.PRNGKey(0)
    params = init_params(key)

    # 1) Single full-extent block path; batch deliberately not a multiple of 8.
    x_small = jax.random.normal(jax.random.fold_in(key, 123), (37, IN_DIM),
                                jnp.float32)
    ref_small = reference_forward(x_small, params)
    out_small = jax.block_until_ready(outlier_graph_decoding(x_small, params))
    assert out_small.shape == (37, OUT_DIM), out_small.shape
    assert jnp.allclose(out_small, ref_small, atol=1e-5, rtol=1e-5), \
        "f32 single-step mismatch vs reference"

    # 2) Tiled path: B=512 -> tb=256, 2 grid steps (both TCs on v7x), f32 out.
    x_big = jax.random.normal(jax.random.fold_in(key, 7), (512, IN_DIM),
                              jnp.float32)
    ref_big = reference_forward(x_big, params)
    out_big = jax.block_until_ready(outlier_graph_decoding(x_big, params))
    assert out_big.shape == (512, OUT_DIM), out_big.shape
    assert jnp.allclose(out_big, ref_big, atol=1e-5, rtol=1e-5), \
        "f32 tiled mismatch vs reference"

    # 3) Optional bf16 output (halves dominant HBM writeback); f32 accumulation.
    out_bf16 = jax.block_until_ready(
        outlier_graph_decoding(x_big, params, out_dtype=jnp.bfloat16))
    assert out_bf16.shape == (512, OUT_DIM), out_bf16.shape
    assert jnp.allclose(out_bf16.astype(jnp.float32), ref_big,
                        atol=1e-1, rtol=5e-2), "bf16-output mismatch vs reference"

    print("KERNEL_OK")
</pallas_src>

<mosaic_0001>
module attributes {stable_mosaic.version = 11 : i64} {
  func.func @_mlp_kernel(%arg0: i32, %arg1: memref<37x16xf32, #tpu.memory_space<vmem>>, %arg2: memref<16x32xf32, #tpu.memory_space<vmem>>, %arg3: memref<1x32xf32, #tpu.memory_space<vmem>>, %arg4: memref<32x64xf32, #tpu.memory_space<vmem>>, %arg5: memref<1x64xf32, #tpu.memory_space<vmem>>, %arg6: memref<64x128xf32, #tpu.memory_space<vmem>>, %arg7: memref<1x128xf32, #tpu.memory_space<vmem>>, %arg8: memref<128x148xf32, #tpu.memory_space<vmem>>, %arg9: memref<1x148xf32, #tpu.memory_space<vmem>>, %arg10: memref<37x148xf32, #tpu.memory_space<vmem>>) attributes {dimension_semantics = [#tpu.dimension_semantics<parallel>], iteration_bounds = array<i64: 1>, scalar_prefetch = 0 : i64, scratch_operands = 0 : i64, tpu.core_type = #tpu.core_type<tc>, window_params = [{transform_indices = @transform_0, window_bounds = array<i64: 37, 16>}, {pipeline_mode = #tpu.pipeline_mode<synchronous>, transform_indices = @transform_1, window_bounds = array<i64: 16, 32>}, {pipeline_mode = #tpu.pipeline_mode<synchronous>, transform_indices = @transform_2, window_bounds = array<i64: 1, 32>}, {pipeline_mode = #tpu.pipeline_mode<synchronous>, transform_indices = @transform_3, window_bounds = array<i64: 32, 64>}, {pipeline_mode = #tpu.pipeline_mode<synchronous>, transform_indices = @transform_4, window_bounds = array<i64: 1, 64>}, {pipeline_mode = #tpu.pipeline_mode<synchronous>, transform_indices = @transform_5, window_bounds = array<i64: 64, 128>}, {pipeline_mode = #tpu.pipeline_mode<synchronous>, transform_indices = @transform_6, window_bounds = array<i64: 1, 128>}, {pipeline_mode = #tpu.pipeline_mode<synchronous>, transform_indices = @transform_7, window_bounds = array<i64: 128, 148>}, {pipeline_mode = #tpu.pipeline_mode<synchronous>, transform_indices = @transform_8, window_bounds = array<i64: 1, 148>}, {transform_indices = @transform_9, window_bounds = array<i64: 37, 148>}]} {
    %c0 = arith.constant 0 : index
    %c0_0 = arith.constant 0 : index
    %0 = vector.load %arg1[%c0, %c0_0] : memref<37x16xf32, #tpu.memory_space<vmem>>, vector<37x16xf32>
    %c0_1 = arith.constant 0 : index
    %c0_2 = arith.constant 0 : index
    %1 = vector.load %arg2[%c0_1, %c0_2] : memref<16x32xf32, #tpu.memory_space<vmem>>, vector<16x32xf32>
    %cst = arith.constant dense<0.000000e+00> : vector<37x32xf32>
    %2 = tpu.matmul %0, %1, %cst {dimension_numbers = #tpu.dot_dimension_numbers<[1], [0], [0], [1], [0, 0, 1, 1], [], []>} : vector<37x16xf32>, vector<16x32xf32>, vector<37x32xf32> -> vector<37x32xf32>
    %c0_3 = arith.constant 0 : index
    %c0_4 = arith.constant 0 : index
    %3 = vector.load %arg3[%c0_3, %c0_4] : memref<1x32xf32, #tpu.memory_space<vmem>>, vector<1x32xf32>
    %4 = vector.broadcast %3 : vector<1x32xf32> to vector<37x32xf32>
    %5 = arith.addf %2, %4 : vector<37x32xf32>
    %cst_5 = arith.constant 0.000000e+00 : f32
    %6 = vector.broadcast %cst_5 : f32 to vector<37x32xf32>
    %7 = arith.maximumf %5, %6 : vector<37x32xf32>
    %c0_6 = arith.constant 0 : index
    %c0_7 = arith.constant 0 : index
    %8 = vector.load %arg4[%c0_6, %c0_7] : memref<32x64xf32, #tpu.memory_space<vmem>>, vector<32x64xf32>
    %cst_8 = arith.constant dense<0.000000e+00> : vector<37x64xf32>
    %9 = tpu.matmul %7, %8, %cst_8 {dimension_numbers = #tpu.dot_dimension_numbers<[1], [0], [0], [1], [0, 0, 1, 1], [], []>} : vector<37x32xf32>, vector<32x64xf32>, vector<37x64xf32> -> vector<37x64xf32>
    %c0_9 = arith.constant 0 : index
    %c0_10 = arith.constant 0 : index
    %10 = vector.load %arg5[%c0_9, %c0_10] : memref<1x64xf32, #tpu.memory_space<vmem>>, vector<1x64xf32>
    %11 = vector.broadcast %10 : vector<1x64xf32> to vector<37x64xf32>
    %12 = arith.addf %9, %11 : vector<37x64xf32>
    %cst_11 = arith.constant 0.000000e+00 : f32
    %13 = vector.broadcast %cst_11 : f32 to vector<37x64xf32>
    %14 = arith.maximumf %12, %13 : vector<37x64xf32>
    %c0_12 = arith.constant 0 : index
    %c0_13 = arith.constant 0 : index
    %15 = vector.load %arg6[%c0_12, %c0_13] : memref<64x128xf32, #tpu.memory_space<vmem>>, vector<64x128xf32>
    %cst_14 = arith.constant dense<0.000000e+00> : vector<37x128xf32>
    %16 = tpu.matmul %14, %15, %cst_14 {dimension_numbers = #tpu.dot_dimension_numbers<[1], [0], [0], [1], [0, 0, 1, 1], [], []>} : vector<37x64xf32>, vector<64x128xf32>, vector<37x128xf32> -> vector<37x128xf32>
    %c0_15 = arith.constant 0 : index
    %c0_16 = arith.constant 0 : index
    %17 = vector.load %arg7[%c0_15, %c0_16] : memref<1x128xf32, #tpu.memory_space<vmem>>, vector<1x128xf32>
    %18 = vector.broadcast %17 : vector<1x128xf32> to vector<37x128xf32>
    %19 = arith.addf %16, %18 : vector<37x128xf32>
    %cst_17 = arith.constant 0.000000e+00 : f32
    %20 = vector.broadcast %cst_17 : f32 to vector<37x128xf32>
    %21 = arith.maximumf %19, %20 : vector<37x128xf32>
    %c0_18 = arith.constant 0 : index
    %c0_19 = arith.constant 0 : index
    %22 = vector.load %arg8[%c0_18, %c0_19] : memref<128x148xf32, #tpu.memory_space<vmem>>, vector<128x148xf32>
    %cst_20 = arith.constant dense<0.000000e+00> : vector<37x148xf32>
    %23 = tpu.matmul %21, %22, %cst_20 {dimension_numbers = #tpu.dot_dimension_numbers<[1], [0], [0], [1], [0, 0, 1, 1], [], []>} : vector<37x128xf32>, vector<128x148xf32>, vector<37x148xf32> -> vector<37x148xf32>
    %c0_21 = arith.constant 0 : index
    %c0_22 = arith.constant 0 : index
    %24 = vector.load %arg9[%c0_21, %c0_22] : memref<1x148xf32, #tpu.memory_space<vmem>>, vector<1x148xf32>
    %25 = vector.broadcast %24 : vector<1x148xf32> to vector<37x148xf32>
    %26 = arith.addf %23, %25 : vector<37x148xf32>
    %c0_23 = arith.constant 0 : index
    %c0_24 = arith.constant 0 : index
    %27 = vector.load %arg10[%c0_23, %c0_24] : memref<37x148xf32, #tpu.memory_space<vmem>>, vector<37x148xf32>
    tpu.vector_store %arg10[%c0_23, %c0_24], %26 {strides = array<i32>} : memref<37x148xf32, #tpu.memory_space<vmem>>, vector<37x148xf32>,
    return
  }
  func.func @transform_0(%arg0: i32) -> (i32, i32) {
    %c0_i32 = arith.constant 0 : i32
    %c0_i32_0 = arith.constant 0 : i32
    return %arg0, %c0_i32 : i32, i32
  }
  func.func @transform_1(%arg0: i32) -> (i32, i32) {
    %c0_i32 = arith.constant 0 : i32
    %c0_i32_0 = arith.constant 0 : i32
    %c0_i32_1 = arith.constant 0 : i32
    return %c0_i32, %c0_i32_0 : i32, i32
  }
  func.func @transform_2(%arg0: i32) -> (i32, i32) {
    %c0_i32 = arith.constant 0 : i32
    %c0_i32_0 = arith.constant 0 : i32
    %c0_i32_1 = arith.constant 0 : i32
    return %c0_i32, %c0_i32_0 : i32, i32
  }
  func.func @transform_3(%arg0: i32) -> (i32, i32) {
    %c0_i32 = arith.constant 0 : i32
    %c0_i32_0 = arith.constant 0 : i32
    %c0_i32_1 = arith.constant 0 : i32
    return %c0_i32, %c0_i32_0 : i32, i32
  }
  func.func @transform_4(%arg0: i32) -> (i32, i32) {
    %c0_i32 = arith.constant 0 : i32
    %c0_i32_0 = arith.constant 0 : i32
    %c0_i32_1 = arith.constant 0 : i32
    return %c0_i32, %c0_i32_0 : i32, i32
  }
  func.func @transform_5(%arg0: i32) -> (i32, i32) {
    %c0_i32 = arith.constant 0 : i32
    %c0_i32_0 = arith.constant 0 : i32
    %c0_i32_1 = arith.constant 0 : i32
    return %c0_i32, %c0_i32_0 : i32, i32
  }
  func.func @transform_6(%arg0: i32) -> (i32, i32) {
    %c0_i32 = arith.constant 0 : i32
    %c0_i32_0 = arith.constant 0 : i32
    %c0_i32_1 = arith.constant 0 : i32
    return %c0_i32, %c0_i32_0 : i32, i32
  }
  func.func @transform_7(%arg0: i32) -> (i32, i32) {
    %c0_i32 = arith.constant 0 : i32
    %c0_i32_0 = arith.constant 0 : i32
    %c0_i32_1 = arith.constant 0 : i32
    return %c0_i32, %c0_i32_0 : i32, i32
  }
  func.func @transform_8(%arg0: i32) -> (i32, i32) {
    %c0_i32 = arith.constant 0 : i32
    %c0_i32_0 = arith.constant 0 : i32
    %c0_i32_1 = arith.constant 0 : i32
    return %c0_i32, %c0_i32_0 : i32, i32
  }
  func.func @transform_9(%arg0: i32) -> (i32, i32) {
    %c0_i32 = arith.constant 0 : i32
    %c0_i32_0 = arith.constant 0 : i32
    return %arg0, %c0_i32 : i32, i32
  }
}

</mosaic_0001>

<llo_original>
// kernel: tpu_custom_call.1
$region0: #{tpu_custom_call.1}
  #allocation0 [shape = 'u32[]', space=smem, size = 0x4, offset = 0x4, fixed_abs, tag = 'smem constant byte address 0x4 - core index']
  #allocation1 [shape = 'u32[144,128]{1,0:T(1,128)}', space=vmem, size = 0x12000, scoped, tag = 'internal scratch']
  %s0 = inlined_call_operand.vmem [shape: f32[37,16], index: 0, kind: input, shape index: {}]
  %s1 = inlined_call_operand.vmem [shape: f32[16,32], index: 1, kind: input, shape index: {}]
  %s2 = inlined_call_operand.vmem [shape: f32[1,32], index: 2, kind: input, shape index: {}]
  %s3 = inlined_call_operand.vmem [shape: f32[32,64], index: 3, kind: input, shape index: {}]
  %s4 = inlined_call_operand.vmem [shape: f32[1,64], index: 4, kind: input, shape index: {}]
  %s5 = inlined_call_operand.vmem [shape: f32[64,128], index: 5, kind: input, shape index: {}]
  %s6 = inlined_call_operand.vmem [shape: f32[1,128], index: 6, kind: input, shape index: {}]
  %s7 = inlined_call_operand.vmem [shape: f32[128,148], index: 7, kind: input, shape index: {}]
  %s8 = inlined_call_operand.vmem [shape: f32[1,148], index: 8, kind: input, shape index: {}]
  %s9 = inlined_call_operand.hbm [shape: f32[37,148], index: 9, kind: output, shape index: {}]
  %s10 = sld [smem:[#allocation0]]
  $region46: #{tpu_custom_call.1} parent=0
    _
  %s12 = ssub.s32 1, %s10
  %s13 = scalar_select 0, %s12, %s10
  $region1: #{tpu_custom_call.1} parent=0
    #allocation2 [shape = 'u8[40960]{0}', space=vmem, size = 0xa000, scoped, tag = 'output window, operand 0, single buffered']
    #allocation3 [shape = 's32[1]{0}', space=sflag, size = 0x4, scoped, tag = 'scoped memory for tpu_custom_call.1']
    %14 = vsyncpa [#allocation3], 0
    // Predicated region
    $region2: #{tpu_custom_call.1} parent=1 // pred_check
      _
    $region3: #{tpu_custom_call.1} parent=1 // pred_check_branch
      %16 = sbr.rel (0) target = $region5
    $region4: #{tpu_custom_call.1} parent=1 // pred_region
      _
    $region5: #{tpu_custom_call.1} parent=1 // pred_fallthru
      _
    // Predicated region
    $region6: #{tpu_custom_call.1} parent=1 // pred_check
      _
    $region7: #{tpu_custom_call.1} parent=1 // pred_check_branch
      %18 = sbr.rel (0) target = $region9
    $region8: #{tpu_custom_call.1} parent=1 // pred_region
      _
    $region9: #{tpu_custom_call.1} parent=1 // pred_fallthru
      _
    // Predicated region
    $region10: #{tpu_custom_call.1} parent=1 // pred_check
      _
    $region11: #{tpu_custom_call.1} parent=1 // pred_check_branch
      %20 = sbr.rel (0) target = $region13
    $region12: #{tpu_custom_call.1} parent=1 // pred_region
      _
    $region13: #{tpu_custom_call.1} parent=1 // pred_fallthru
      _
    // Predicated region
    $region14: #{tpu_custom_call.1} parent=1 // pred_check
      _
    $region15: #{tpu_custom_call.1} parent=1 // pred_check_branch
      %22 = sbr.rel (0) target = $region17
    $region16: #{tpu_custom_call.1} parent=1 // pred_region
      _
    $region17: #{tpu_custom_call.1} parent=1 // pred_fallthru
      _
    // Predicated region
    $region18: #{tpu_custom_call.1} parent=1 // pred_check
      _
    $region19: #{tpu_custom_call.1} parent=1 // pred_check_branch
      %24 = sbr.rel (0) target = $region21
    $region20: #{tpu_custom_call.1} parent=1 // pred_region
      _
    $region21: #{tpu_custom_call.1} parent=1 // pred_fallthru
      _
    // Predicated region
    $region22: #{tpu_custom_call.1} parent=1 // pred_check
      _
    $region23: #{tpu_custom_call.1} parent=1 // pred_check_branch
      %26 = sbr.rel (0) target = $region25
    $region24: #{tpu_custom_call.1} parent=1 // pred_region
      _
    $region25: #{tpu_custom_call.1} parent=1 // pred_fallthru
      _
    // Predicated region
    $region26: #{tpu_custom_call.1} parent=1 // pred_check
      _
    $region27: #{tpu_custom_call.1} parent=1 // pred_check_branch
      %28 = sbr.rel (0) target = $region29
    $region28: #{tpu_custom_call.1} parent=1 // pred_region
      _
    $region29: #{tpu_custom_call.1} parent=1 // pred_fallthru
      _
    // Predicated region
    $region30: #{tpu_custom_call.1} parent=1 // pred_check
      _
    $region31: #{tpu_custom_call.1} parent=1 // pred_check_branch
      %30 = sbr.rel (0) target = $region33
    $region32: #{tpu_custom_call.1} parent=1 // pred_region
      _
    $region33: #{tpu_custom_call.1} parent=1 // pred_fallthru
      _
    // Predicated region
    $region34: #{tpu_custom_call.1} parent=1 // pred_check
      _
    $region35: #{tpu_custom_call.1} parent=1 // pred_check_branch
      %32 = sbr.rel (0) target = $region37
    $region36: #{tpu_custom_call.1} parent=1 // pred_region
      _
    $region37: #{tpu_custom_call.1} parent=1 // pred_fallthru
      _
    %v33 = vld [vmem:[%s0] sm:$0xff]
    %v34 = vld [vmem:[%s0 + $0x8] sm:$0xff]
    %v35 = vld [vmem:[%s0 + $0x10] sm:$0xff]
    %v36 = vld [vmem:[%s0 + $0x18] sm:$0xff]
    %v37 = vld [vmem:[%s0 + $0x20] sm:$0x1f]
    %v38 = vld [vmem:[%s1] sm:$0xff]
    %v39 = vld [vmem:[%s1 + $0x8] sm:$0xff]
    %v40 = vld [vmem:[%s2] sm:$0x1]
    %v42 = vlaneseq
    %v43 = vshrl.u32 %v42, 7
    %v44 = vsub.s32 0, %v43
    %v45 = vrot.slane %v40, %v44
    %vm47 = vcmask 130048
    %v49 = vsel %vm47, %v33, 0
    %v52 = vsel %vm47, %v34, 0
    %v55 = vsel %vm47, %v35, 0
    %v58 = vsel %vm47, %v36, 0
    %v61 = vsel %vm47, %v37, 0
    %63 = vmatprep.subr.mxu0 0.0
    %64 = vmatpush1.msra.mxu0 0.0
    %65 = vmatprep.subr.mxu0 0.0
    %66 = vmatpush1.msra.mxu0 0.0
    %67 = vmatprep.subr.mxu0 0.0
    %68 = vmatpush1.msra.mxu0 0.0
    %69 = vmatprep.subr.mxu0 0.0
    %70 = vmatpush1.msra.mxu0 0.0
    %71 = vmatprep.subr.mxu0 0.0
    %72 = vmatpush1.msra.mxu0 0.0
    %73 = vmatprep.subr.mxu0 0.0
    %74 = vmatpush1.msra.mxu0 0.0
    %75 = vmatprep.subr.mxu0 0.0
    %76 = vmatpush1.msra.mxu0 0.0
    %77 = vmatprep.subr.mxu0 0.0
    %78 = vmatpush1.msra.mxu0 0.0
    %79 = vmatprep.subr.mxu0 0.0
    %80 = vmatpush1.msra.mxu0 0.0
    %81 = vmatprep.subr.mxu0 0.0
    %82 = vmatpush1.msra.mxu0 0.0
    %83 = vmatprep.subr.mxu0 0.0
    %84 = vmatpush1.msra.mxu0 0.0
    %85 = vmatprep.subr.mxu0 0.0
    %86 = vmatpush1.msra.mxu0 0.0
    %87 = vmatprep.subr.mxu0 0.0
    %88 = vmatpush1.msra.mxu0 0.0
    %89 = vmatprep.subr.mxu0 0.0
    %90 = vmatpush1.msra.mxu0 0.0
    %91 = vmatprep.subr.mxu0 0.0
    %92 = vmatpush1.msra.mxu0 %v39
    %93 = vmatprep.subr.mxu0 0.0
    %94 = vmatpush1.msra.mxu0 %v38
    %95 = vmatprep.subr.mxu0 0.0
    %96 = vmatpush2.msra.mxu0 0.0
    %97 = vmatprep.subr.mxu0 0.0
    %98 = vmatpush2.msra.mxu0 0.0
    %99 = vmatprep.subr.mxu0 0.0
    %100 = vmatpush2.msra.mxu0 0.0
    %101 = vmatprep.subr.mxu0 0.0
    %102 = vmatpush2.msra.mxu0 0.0
    %103 = vmatprep.subr.mxu0 0.0
    %104 = vmatpush2.msra.mxu0 0.0
    %105 = vmatprep.subr.mxu0 0.0
    %106 = vmatpush2.msra.mxu0 0.0
    %107 = vmatprep.subr.mxu0 0.0
    %108 = vmatpush2.msra.mxu0 0.0
    %109 = vmatprep.subr.mxu0 0.0
    %110 = vmatpush2.msra.mxu0 0.0
    %111 = vmatprep.subr.mxu0 0.0
    %112 = vmatpush2.msra.mxu0 0.0
    %113 = vmatprep.subr.mxu0 0.0
    %114 = vmatpush2.msra.mxu0 0.0
    %115 = vmatprep.subr.mxu0 0.0
    %116 = vmatpush2.msra.mxu0 0.0
    %117 = vmatprep.subr.mxu0 0.0
    %118 = vmatpush2.msra.mxu0 0.0
    %119 = vmatprep.subr.mxu0 0.0
    %120 = vmatpush2.msra.mxu0 0.0
    %121 = vmatprep.subr.mxu0 0.0
    %122 = vmatpush2.msra.mxu0 0.0
    %123 = vmatprep.subr.mxu0 0.0
    %124 = vmatpush2.msra.mxu0 0.0
    %125 = vmatprep.subr.mxu0 0.0
    %126 = vmatpush2.msra.mxu0 0.0
    %127 = vmatprep.mubr.f32.mxu0 0.0
    %128 = vmatmul.mubr.f32.gmra.mxu0 %v49
    %v129 = vpop.f32.mrf.mxu0
    %v130 = vadd.f32 %v45, %v129
    %v131 = vpop.f32.mrf.mxu0
    %132 = vmatprep.mubr.f32.mxu0 0.0
    %133 = vmatmul.mubr.f32.gmra.mxu0 %v52
    %v134 = vpop.f32.mrf.mxu0
    %v135 = vadd.f32 %v45, %v134
    %v136 = vpop.f32.mrf.mxu0
    %137 = vmatprep.mubr.f32.mxu0 0.0
    %138 = vmatmul.mubr.f32.gmra.mxu0 %v55
    %v139 = vpop.f32.mrf.mxu0
    %v140 = vadd.f32 %v45, %v139
    %v141 = vpop.f32.mrf.mxu0
    %142 = vmatprep.mubr.f32.mxu0 0.0
    %143 = vmatmul.mubr.f32.gmra.mxu0 %v58
    %v144 = vpop.f32.mrf.mxu0
    %v145 = vadd.f32 %v45, %v144
    %v146 = vpop.f32.mrf.mxu0
    %147 = vmatprep.mubr.f32.mxu0 0.0
    %148 = vmatmul.mubr.f32.gmra.mxu0 %v61
    %v149 = vpop.f32.mrf.mxu0
    %v150 = vadd.f32 %v45, %v149
    %v151 = vpop.f32.mrf.mxu0
    %152 = vdwg.mxu0
    %v153 = vmax.f32 %v130, 0.0
    %v154 = vmax.f32 %v135, 0.0
    %v155 = vmax.f32 %v140, 0.0
    %v156 = vmax.f32 %v145, 0.0
    %v157 = vmax.f32 %v150, 0.0
    %v158 = vld [vmem:[%s3] sm:$0xff]
    %v159 = vld [vmem:[%s3 + $0x8] sm:$0xff]
    %v160 = vld [vmem:[%s3 + $0x10] sm:$0xff]
    %v161 = vld [vmem:[%s3 + $0x18] sm:$0xff]
    %v162 = vld [vmem:[%s4] sm:$0x1]
    %v164 = vlaneseq
    %v165 = vshrl.u32 %v164, 7
    %v166 = vsub.s32 0, %v165
    %v167 = vrot.slane %v162, %v166
    %vm169 = vcmask 261120
    %v171 = vsel %vm169, %v153, 0
    %v174 = vsel %vm169, %v154, 0
    %v177 = vsel %vm169, %v155, 0
    %v180 = vsel %vm169, %v156, 0
    %v183 = vsel %vm169, %v157, 0
    %185 = vmatprep.subr.mxu0 0.0
    %186 = vmatpush1.msra.mxu0 0.0
    %187 = vmatprep.subr.mxu0 0.0
    %188 = vmatpush1.msra.mxu0 0.0
    %189 = vmatprep.subr.mxu0 0.0
    %190 = vmatpush1.msra.mxu0 0.0
    %191 = vmatprep.subr.mxu0 0.0
    %192 = vmatpush1.msra.mxu0 0.0
    %193 = vmatprep.subr.mxu0 0.0
    %194 = vmatpush1.msra.mxu0 0.0
    %195 = vmatprep.subr.mxu0 0.0
    %196 = vmatpush1.msra.mxu0 0.0
    %197 = vmatprep.subr.mxu0 0.0
    %198 = vmatpush1.msra.mxu0 0.0
    %199 = vmatprep.subr.mxu0 0.0
    %200 = vmatpush1.msra.mxu0 0.0
    %201 = vmatprep.subr.mxu0 0.0
    %202 = vmatpush1.msra.mxu0 0.0
    %203 = vmatprep.subr.mxu0 0.0
    %204 = vmatpush1.msra.mxu0 0.0
    %205 = vmatprep.subr.mxu0 0.0
    %206 = vmatpush1.msra.mxu0 0.0
    %207 = vmatprep.subr.mxu0 0.0
    %208 = vmatpush1.msra.mxu0 0.0
    %209 = vmatprep.subr.mxu0 0.0
    %210 = vmatpush1.msra.mxu0 %v161
    %211 = vmatprep.subr.mxu0 0.0
    %212 = vmatpush1.msra.mxu0 %v160
    %213 = vmatprep.subr.mxu0 0.0
    %214 = vmatpush1.msra.mxu0 %v159
    %215 = vmatprep.subr.mxu0 0.0
    %216 = vmatpush1.msra.mxu0 %v158
    %217 = vmatprep.subr.mxu0 0.0
    %218 = vmatpush2.msra.mxu0 0.0
    %219 = vmatprep.subr.mxu0 0.0
    %220 = vmatpush2.msra.mxu0 0.0
    %221 = vmatprep.subr.mxu0 0.0
    %222 = vmatpush2.msra.mxu0 0.0
    %223 = vmatprep.subr.mxu0 0.0
    %224 = vmatpush2.msra.mxu0 0.0
    %225 = vmatprep.subr.mxu0 0.0
    %226 = vmatpush2.msra.mxu0 0.0
    %227 = vmatprep.subr.mxu0 0.0
    %228 = vmatpush2.msra.mxu0 0.0
    %229 = vmatprep.subr.mxu0 0.0
    %230 = vmatpush2.msra.mxu0 0.0
    %231 = vmatprep.subr.mxu0 0.0
    %232 = vmatpush2.msra.mxu0 0.0
    %233 = vmatprep.subr.mxu0 0.0
    %234 = vmatpush2.msra.mxu0 0.0
    %235 = vmatprep.subr.mxu0 0.0
    %236 = vmatpush2.msra.mxu0 0.0
    %237 = vmatprep.subr.mxu0 0.0
    %238 = vmatpush2.msra.mxu0 0.0
    %239 = vmatprep.subr.mxu0 0.0
    %240 = vmatpush2.msra.mxu0 0.0
    %241 = vmatprep.subr.mxu0 0.0
    %242 = vmatpush2.msra.mxu0 0.0
    %243 = vmatprep.subr.mxu0 0.0
    %244 = vmatpush2.msra.mxu0 0.0
    %245 = vmatprep.subr.mxu0 0.0
    %246 = vmatpush2.msra.mxu0 0.0
    %247 = vmatprep.subr.mxu0 0.0
    %248 = vmatpush2.msra.mxu0 0.0
    %249 = vmatprep.mubr.f32.mxu0 0.0
    %250 = vmatmul.mubr.f32.gmra.mxu0 %v171
    %v251 = vpop.f32.mrf.mxu0
    %v252 = vadd.f32 %v167, %v251
    %v253 = vpop.f32.mrf.mxu0
    %254 = vmatprep.mubr.f32.mxu0 0.0
    %255 = vmatmul.mubr.f32.gmra.mxu0 %v174
    %v256 = vpop.f32.mrf.mxu0
    %v257 = vadd.f32 %v167, %v256
    %v258 = vpop.f32.mrf.mxu0
    %259 = vmatprep.mubr.f32.mxu0 0.0
    %260 = vmatmul.mubr.f32.gmra.mxu0 %v177
    %v261 = vpop.f32.mrf.mxu0
    %v262 = vadd.f32 %v167, %v261
    %v263 = vpop.f32.mrf.mxu0
    %264 = vmatprep.mubr.f32.mxu0 0.0
    %265 = vmatmul.mubr.f32.gmra.mxu0 %v180
    %v266 = vpop.f32.mrf.mxu0
    %v267 = vadd.f32 %v167, %v266
    %v268 = vpop.f32.mrf.mxu0
    %269 = vmatprep.mubr.f32.mxu0 0.0
    %270 = vmatmul.mubr.f32.gmra.mxu0 %v183
    %v271 = vpop.f32.mrf.mxu0
    %v272 = vadd.f32 %v167, %v271
    %v273 = vpop.f32.mrf.mxu0
    %274 = vdwg.mxu0
    %v275 = vmax.f32 %v252, 0.0
    %v276 = vmax.f32 %v257, 0.0
    %v277 = vmax.f32 %v262, 0.0
    %v278 = vmax.f32 %v267, 0.0
    %v279 = vmax.f32 %v272, 0.0
    %v280 = vld [vmem:[%s5] sm:$0xff]
    %v281 = vld [vmem:[%s5 + $0x8] sm:$0xff]
    %v282 = vld [vmem:[%s5 + $0x10] sm:$0xff]
    %v283 = vld [vmem:[%s5 + $0x18] sm:$0xff]
    %v284 = vld [vmem:[%s5 + $0x20] sm:$0xff]
    %v285 = vld [vmem:[%s5 + $0x28] sm:$0xff]
    %v286 = vld [vmem:[%s5 + $0x30] sm:$0xff]
    %v287 = vld [vmem:[%s5 + $0x38] sm:$0xff]
    %v288 = vld [vmem:[%s6] sm:$0x1]
    %v290 = vlaneseq
    %v291 = vshrl.u32 %v290, 7
    %v292 = vsub.s32 0, %v291
    %v293 = vrot.slane %v288, %v292
    %vm295 = vcmask 523264
    %v297 = vsel %vm295, %v275, 0
    %v300 = vsel %vm295, %v276, 0
    %v303 = vsel %vm295, %v277, 0
    %v306 = vsel %vm295, %v278, 0
    %v309 = vsel %vm295, %v279, 0
    %311 = vmatprep.subr.mxu0 0.0
    %312 = vmatpush1.msra.mxu0 0.0
    %313 = vmatprep.subr.mxu0 0.0
    %314 = vmatpush1.msra.mxu0 0.0
    %315 = vmatprep.subr.mxu0 0.0
    %316 = vmatpush1.msra.mxu0 0.0
    %317 = vmatprep.subr.mxu0 0.0
    %318 = vmatpush1.msra.mxu0 0.0
    %319 = vmatprep.subr.mxu0 0.0
    %320 = vmatpush1.msra.mxu0 0.0
    %321 = vmatprep.subr.mxu0 0.0
    %322 = vmatpush1.msra.mxu0 0.0
    %323 = vmatprep.subr.mxu0 0.0
    %324 = vmatpush1.msra.mxu0 0.0
    %325 = vmatprep.subr.mxu0 0.0
    %326 = vmatpush1.msra.mxu0 0.0
    %327 = vmatprep.subr.mxu0 0.0
    %328 = vmatpush1.msra.mxu0 %v287
    %329 = vmatprep.subr.mxu0 0.0
    %330 = vmatpush1.msra.mxu0 %v286
    %331 = vmatprep.subr.mxu0 0.0
    %332 = vmatpush1.msra.mxu0 %v285
    %333 = vmatprep.subr.mxu0 0.0
    %334 = vmatpush1.msra.mxu0 %v284
    %335 = vmatprep.subr.mxu0 0.0
    %336 = vmatpush1.msra.mxu0 %v283
    %337 = vmatprep.subr.mxu0 0.0
    %338 = vmatpush1.msra.mxu0 %v282
    %339 = vmatprep.subr.mxu0 0.0
    %340 = vmatpush1.msra.mxu0 %v281
    %341 = vmatprep.subr.mxu0 0.0
    %342 = vmatpush1.msra.mxu0 %v280
    %343 = vmatprep.subr.mxu0 0.0
    %344 = vmatpush2.msra.mxu0 0.0
    %345 = vmatprep.subr.mxu0 0.0
    %346 = vmatpush2.msra.mxu0 0.0
    %347 = vmatprep.subr.mxu0 0.0
    %348 = vmatpush2.msra.mxu0 0.0
    %349 = vmatprep.subr.mxu0 0.0
    %350 = vmatpush2.msra.mxu0 0.0
    %351 = vmatprep.subr.mxu0 0.0
    %352 = vmatpush2.msra.mxu0 0.0
    %353 = vmatprep.subr.mxu0 0.0
    %354 = vmatpush2.msra.mxu0 0.0
    %355 = vmatprep.subr.mxu0 0.0
    %356 = vmatpush2.msra.mxu0 0.0
    %357 = vmatprep.subr.mxu0 0.0
    %358 = vmatpush2.msra.mxu0 0.0
    %359 = vmatprep.subr.mxu0 0.0
    %360 = vmatpush2.msra.mxu0 0.0
    %361 = vmatprep.subr.mxu0 0.0
    %362 = vmatpush2.msra.mxu0 0.0
    %363 = vmatprep.subr.mxu0 0.0
    %364 = vmatpush2.msra.mxu0 0.0
    %365 = vmatprep.subr.mxu0 0.0
    %366 = vmatpush2.msra.mxu0 0.0
    %367 = vmatprep.subr.mxu0 0.0
    %368 = vmatpush2.msra.mxu0 0.0
    %369 = vmatprep.subr.mxu0 0.0
    %370 = vmatpush2.msra.mxu0 0.0
    %371 = vmatprep.subr.mxu0 0.0
    %372 = vmatpush2.msra.mxu0 0.0
    %373 = vmatprep.subr.mxu0 0.0
    %374 = vmatpush2.msra.mxu0 0.0
    %375 = vmatprep.mubr.f32.mxu0 0.0
    %376 = vmatmul.mubr.f32.gmra.mxu0 %v297
    %v377 = vpop.f32.mrf.mxu0
    %v378 = vadd.f32 %v293, %v377
    %v379 = vpop.f32.mrf.mxu0
    %380 = vmatprep.mubr.f32.mxu0 0.0
    %381 = vmatmul.mubr.f32.gmra.mxu0 %v300
    %v382 = vpop.f32.mrf.mxu0
    %v383 = vadd.f32 %v293, %v382
    %v384 = vpop.f32.mrf.mxu0
    %385 = vmatprep.mubr.f32.mxu0 0.0
    %386 = vmatmul.mubr.f32.gmra.mxu0 %v303
    %v387 = vpop.f32.mrf.mxu0
    %v388 = vadd.f32 %v293, %v387
    %v389 = vpop.f32.mrf.mxu0
    %390 = vmatprep.mubr.f32.mxu0 0.0
    %391 = vmatmul.mubr.f32.gmra.mxu0 %v306
    %v392 = vpop.f32.mrf.mxu0
    %v393 = vadd.f32 %v293, %v392
    %v394 = vpop.f32.mrf.mxu0
    %395 = vmatprep.mubr.f32.mxu0 0.0
    %396 = vmatmul.mubr.f32.gmra.mxu0 %v309
    %v397 = vpop.f32.mrf.mxu0
    %v398 = vadd.f32 %v293, %v397
    %v399 = vpop.f32.mrf.mxu0
    %400 = vdwg.mxu0
    %v401 = vmax.f32 %v378, 0.0
    %v402 = vmax.f32 %v383, 0.0
    %v403 = vmax.f32 %v388, 0.0
    %v404 = vmax.f32 %v393, 0.0
    %v405 = vmax.f32 %v398, 0.0
    %v406 = vld [vmem:[%s7] sm:$0xff]
    %v407 = vld [vmem:[%s7 + $0x8] sm:$0xff]
    %v408 = vld [vmem:[%s7 + $0x10] sm:$0xff]
    %v409 = vld [vmem:[%s7 + $0x18] sm:$0xff]
    %v410 = vld [vmem:[%s7 + $0x20] sm:$0xff]
    %v411 = vld [vmem:[%s7 + $0x28] sm:$0xff]
    %v412 = vld [vmem:[%s7 + $0x30] sm:$0xff]
    %v413 = vld [vmem:[%s7 + $0x38] sm:$0xff]
    %v414 = vld [vmem:[%s7 + $0x40] sm:$0xff]
    %v415 = vld [vmem:[%s7 + $0x48] sm:$0xff]
    %v416 = vld [vmem:[%s7 + $0x50] sm:$0xff]
    %v417 = vld [vmem:[%s7 + $0x58] sm:$0xff]
    %v418 = vld [vmem:[%s7 + $0x60] sm:$0xff]
    %v419 = vld [vmem:[%s7 + $0x68] sm:$0xff]
    %v420 = vld [vmem:[%s7 + $0x70] sm:$0xff]
    %v421 = vld [vmem:[%s7 + $0x78] sm:$0xff]
    %v422 = vld [vmem:[%s7 + $0x80] sm:$0xff]
    %v423 = vld [vmem:[%s7 + $0x88] sm:$0xff]
    %v424 = vld [vmem:[%s7 + $0x90] sm:$0xff]
    %v425 = vld [vmem:[%s7 + $0x98] sm:$0xff]
    %v426 = vld [vmem:[%s7 + $0xa0] sm:$0xff]
    %v427 = vld [vmem:[%s7 + $0xa8] sm:$0xff]
    %v428 = vld [vmem:[%s7 + $0xb0] sm:$0xff]
    %v429 = vld [vmem:[%s7 + $0xb8] sm:$0xff]
    %v430 = vld [vmem:[%s7 + $0xc0] sm:$0xff]
    %v431 = vld [vmem:[%s7 + $0xc8] sm:$0xff]
    %v432 = vld [vmem:[%s7 + $0xd0] sm:$0xff]
    %v433 = vld [vmem:[%s7 + $0xd8] sm:$0xff]
    %v434 = vld [vmem:[%s7 + $0xe0] sm:$0xff]
    %v435 = vld [vmem:[%s7 + $0xe8] sm:$0xff]
    %v436 = vld [vmem:[%s7 + $0xf0] sm:$0xff]
    %v437 = vld [vmem:[%s7 + $0xf8] sm:$0xff]
    %v438 = vld [vmem:[%s8] sm:$0x3]
    %v440 = vlaneseq
    %v441 = vshrl.u32 %v440, 7
    %v442 = vsub.s32 0, %v441
    %v443 = vrot.slane %v438, %v442
    %v444 = vlaneseq
    %v445 = vshrl.u32 %v444, 7
    %v446 = vsub.s32 1, %v445
    %v447 = vrot.slane %v438, %v446
    %450 = vmatprep.subr.mxu0 %v437
    %451 = vmatpush1.msra.mxu0 %v436
    %452 = vmatprep.subr.mxu0 %v435
    %453 = vmatpush1.msra.mxu0 %v434
    %454 = vmatprep.subr.mxu0 %v433
    %455 = vmatpush1.msra.mxu0 %v432
    %456 = vmatprep.subr.mxu0 %v431
    %457 = vmatpush1.msra.mxu0 %v430
    %458 = vmatprep.subr.mxu0 %v429
    %459 = vmatpush1.msra.mxu0 %v428
    %460 = vmatprep.subr.mxu0 %v427
    %461 = vmatpush1.msra.mxu0 %v426
    %462 = vmatprep.subr.mxu0 %v425
    %463 = vmatpush1.msra.mxu0 %v424
    %464 = vmatprep.subr.mxu0 %v423
    %465 = vmatpush1.msra.mxu0 %v422
    %466 = vmatprep.subr.mxu0 %v421
    %467 = vmatpush1.msra.mxu0 %v420
    %468 = vmatprep.subr.mxu0 %v419
    %469 = vmatpush1.msra.mxu0 %v418
    %470 = vmatprep.subr.mxu0 %v417
    %471 = vmatpush1.msra.mxu0 %v416
    %472 = vmatprep.subr.mxu0 %v415
    %473 = vmatpush1.msra.mxu0 %v414
    %474 = vmatprep.subr.mxu0 %v413
    %475 = vmatpush1.msra.mxu0 %v412
    %476 = vmatprep.subr.mxu0 %v411
    %477 = vmatpush1.msra.mxu0 %v410
    %478 = vmatprep.subr.mxu0 %v409
    %479 = vmatpush1.msra.mxu0 %v408
    %480 = vmatprep.subr.mxu0 %v407
    %481 = vmatpush1.msra.mxu0 %v406
    %482 = vmatprep.subr.mxu0 0.0
    %483 = vmatpush2.msra.mxu0 0.0
    %484 = vmatprep.subr.mxu0 0.0
    %485 = vmatpush2.msra.mxu0 0.0
    %486 = vmatprep.subr.mxu0 0.0
    %487 = vmatpush2.msra.mxu0 0.0
    %488 = vmatprep.subr.mxu0 0.0
    %489 = vmatpush2.msra.mxu0 0.0
    %490 = vmatprep.subr.mxu0 0.0
    %491 = vmatpush2.msra.mxu0 0.0
    %492 = vmatprep.subr.mxu0 0.0
    %493 = vmatpush2.msra.mxu0 0.0
    %494 = vmatprep.subr.mxu0 0.0
    %495 = vmatpush2.msra.mxu0 0.0
    %496 = vmatprep.subr.mxu0 0.0
    %497 = vmatpush2.msra.mxu0 0.0
    %498 = vmatprep.subr.mxu0 0.0
    %499 = vmatpush2.msra.mxu0 0.0
    %500 = vmatprep.subr.mxu0 0.0
    %501 = vmatpush2.msra.mxu0 0.0
    %502 = vmatprep.subr.mxu0 0.0
    %503 = vmatpush2.msra.mxu0 0.0
    %504 = vmatprep.subr.mxu0 0.0
    %505 = vmatpush2.msra.mxu0 0.0
    %506 = vmatprep.subr.mxu0 0.0
    %507 = vmatpush2.msra.mxu0 0.0
    %508 = vmatprep.subr.mxu0 0.0
    %509 = vmatpush2.msra.mxu0 0.0
    %510 = vmatprep.subr.mxu0 0.0
    %511 = vmatpush2.msra.mxu0 0.0
    %512 = vmatprep.subr.mxu0 0.0
    %513 = vmatpush2.msra.mxu0 0.0
    %514 = vmatprep.mubr.f32.mxu0 0.0
    %515 = vmatmul.mubr.f32.gmra.mxu0 %v401
    %v516 = vpop.f32.mrf.mxu0
    %v517 = vadd.f32 %v443, %v516
    %v518 = vpop.f32.mrf.mxu0
    %v519 = vadd.f32 %v447, %v518
    %520 = vmatprep.mubr.f32.mxu0 0.0
    %521 = vmatmul.mubr.f32.gmra.mxu0 %v402
    %v522 = vpop.f32.mrf.mxu0
    %v523 = vadd.f32 %v443, %v522
    %v524 = vpop.f32.mrf.mxu0
    %v525 = vadd.f32 %v447, %v524
    %526 = vmatprep.mubr.f32.mxu0 0.0
    %527 = vmatmul.mubr.f32.gmra.mxu0 %v403
    %v528 = vpop.f32.mrf.mxu0
    %v529 = vadd.f32 %v443, %v528
    %v530 = vpop.f32.mrf.mxu0
    %v531 = vadd.f32 %v447, %v530
    %532 = vmatprep.mubr.f32.mxu0 0.0
    %533 = vmatmul.mubr.f32.gmra.mxu0 %v404
    %v534 = vpop.f32.mrf.mxu0
    %v535 = vadd.f32 %v443, %v534
    %v536 = vpop.f32.mrf.mxu0
    %v537 = vadd.f32 %v447, %v536
    %538 = vmatprep.mubr.f32.mxu0 0.0
    %539 = vmatmul.mubr.f32.gmra.mxu0 %v405
    %v540 = vpop.f32.mrf.mxu0
    %v541 = vadd.f32 %v443, %v540
    %v542 = vpop.f32.mrf.mxu0
    %v543 = vadd.f32 %v447, %v542
    %544 = vdwg.mxu0
    %545 = vst [vmem:[#allocation2] sm:$0xff] %v517
    %vm546 = vcmask 162816
    %547 = vst.msk [vmem:[#allocation2 + $0x8] sm:$0xff] %vm546, %v519
    %548 = vst [vmem:[#allocation2 + $0x10] sm:$0xff] %v523
    %549 = vst.msk [vmem:[#allocation2 + $0x18] sm:$0xff] %vm546, %v525
    %550 = vst [vmem:[#allocation2 + $0x20] sm:$0xff] %v529
    %551 = vst.msk [vmem:[#allocation2 + $0x28] sm:$0xff] %vm546, %v531
    %552 = vst [vmem:[#allocation2 + $0x30] sm:$0xff] %v535
    %553 = vst.msk [vmem:[#allocation2 + $0x38] sm:$0xff] %vm546, %v537
    %554 = vst [vmem:[#allocation2 + $0x40] sm:$0x1f] %v541
    %vm555 = vcmask 159744
    %556 = vst.msk [vmem:[#allocation2 + $0x48] sm:$0x1f] %vm555, %v543
    // Predicated region
    $region38: #{tpu_custom_call.1} parent=1 // pred_check
      _
    $region39: #{tpu_custom_call.1} parent=1 // pred_check_branch
      %558 = sbr.rel (0) target = $region41
    $region40: #{tpu_custom_call.1} parent=1 // pred_region
      %s560 = ssub.s32 1280, 1280
      %561 = vsyncadd [#allocation3], %s560
      %s562 = sshll.u32 [#allocation2], 4
      %s563 = int_to_ptr.vmem [resolvable:$true] %s562
      %568 = dma.vmem_to_hbm [thread:$0]  %s563, 1280, %s9, [#allocation3], 256, 256, 16
    $region41: #{tpu_custom_call.1} parent=1 // pred_fallthru
      _
    // Predicated region
    $region42: #{tpu_custom_call.1} parent=1 // pred_check
      _
    $region43: #{tpu_custom_call.1} parent=1 // pred_check_branch
      %570 = sbr.rel (0) target = $region45
    $region44: #{tpu_custom_call.1} parent=1 // pred_region
      %571 = dma.done [#allocation3], 1280
    $region45: #{tpu_custom_call.1} parent=1 // pred_fallthru
      _
    %572 = vsyncpa [#allocation3], 1

</llo_original>
